<compile_context>
chip_gen: v7x
topology: tpu7x:2x2x1
jax: 0.10.0
libtpu: 0.0.40
codegen_flags: <defaults>
</compile_context>

<pallas_src>
import functools

import jax
import jax.numpy as jnp
import numpy as np
from jax.experimental import pallas as pl
from jax.experimental.pallas import tpu as pltpu

_LANES = 128


def _round_up(x, m):
    return ((x + m - 1) // m) * m


def _complex_norm_kernel(re_ref, im_ref, o_ref, *, power: float, mono: bool):
    """One (row-tile, batch) grid point.

    re_ref, im_ref : (1, C, TR, 128)  real / imag parts
    o_ref          : (1, C_out, TR, 128) with C_out = 1 if mono else C
    """
    re = re_ref[...].astype(jnp.float32)
    im = im_ref[...].astype(jnp.float32)
    sq = re * re + im * im                       # |z|^2, elementwise (VPU)
    if power == 2.0:
        mag = sq                                 # |z|^2
    elif power == 1.0:
        mag = jnp.sqrt(sq)                       # |z|
    else:
        mag = jnp.power(sq, power * 0.5)         # |z|^power
    if mono:
        mag = jnp.mean(mag, axis=1, keepdims=True)   # mean over channels
    o_ref[...] = mag.astype(o_ref.dtype)


def complex_norm_slicqt(spec, *, power: float = 1.0, mono: bool = False,
                        target_block_bytes: int = 2 * 1024 * 1024):
    """Pallas equivalent of ComplexNormSliCQT.forward (list in -> list out).

    spec: list of arrays, each (B, C, *spatial, 2) with last dim = (real, imag)
    returns: list of arrays, each (B, C_out, *spatial), C_out = 1 if mono else C
    """
    assert len(spec) > 0
    B, C = spec[0].shape[0], spec[0].shape[1]
    dtype = spec[0].dtype
    itemsize = np.dtype(dtype).itemsize

    sizes = []
    for x in spec:
        assert x.shape[0] == B and x.shape[1] == C and x.shape[-1] == 2
        spatial = x.shape[2:-1]
        sizes.append(int(np.prod(spatial)) if spatial else 1)

    m_tot = int(sum(sizes))
    rows = pl.cdiv(m_tot, _LANES)

    # Tile rows: ~target_block_bytes per input buffer, multiple of 8 sublanes,
    # capped at the (8-rounded) total row count for tiny inputs.
    tr = max(8, (target_block_bytes // (C * _LANES * itemsize)) // 8 * 8)
    tr = min(tr, _round_up(rows, 8))
    rows_pad = _round_up(rows, tr)
    m_pad = rows_pad * _LANES

    # Glue: deinterleave real/imag and fuse all ragged blocks (plus the zero
    # tail-pad) in a single concatenate per component; the (rows, 128) reshape
    # is free.
    re_parts, im_parts = [], []
    for x in spec:
        xf = x.reshape(B, C, -1, 2)
        re_parts.append(xf[..., 0])
        im_parts.append(xf[..., 1])
    if m_pad > m_tot:
        zpad = jnp.zeros((B, C, m_pad - m_tot), dtype=dtype)
        re_parts.append(zpad)
        im_parts.append(zpad)
    re = jnp.concatenate(re_parts, axis=2).reshape(B, C, rows_pad, _LANES)
    im = jnp.concatenate(im_parts, axis=2).reshape(B, C, rows_pad, _LANES)

    c_out = 1 if mono else C
    grid = (rows_pad // tr, B)            # long parallel axis first (v7x 2-TC)
    kernel = functools.partial(_complex_norm_kernel, power=power, mono=mono)
    in_spec = pl.BlockSpec((1, C, tr, _LANES), lambda r, b: (b, 0, r, 0))

    out = pl.pallas_call(
        kernel,
        out_shape=jax.ShapeDtypeStruct((B, c_out, rows_pad, _LANES), dtype),
        grid=grid,
        in_specs=[in_spec, in_spec],
        out_specs=pl.BlockSpec((1, c_out, tr, _LANES),
                               lambda r, b: (b, 0, r, 0)),
        compiler_params=pltpu.CompilerParams(
            dimension_semantics=("parallel", "parallel"),
            vmem_limit_bytes=32 * 1024 * 1024,
        ),
    )(re, im)

    # Split the fused output back into the ragged per-block shapes.
    flat = out.reshape(B, c_out, m_pad)
    ret, off = [], 0
    for x, m in zip(spec, sizes):
        spatial = x.shape[2:-1]
        ret.append(flat[:, :, off:off + m].reshape((B, c_out) + spatial))
        off += m
    return ret


def complex_norm_block(x, *, power: float = 1.0, mono: bool = False):
    """Single-block convenience wrapper (same semantics, one-element list)."""
    return complex_norm_slicqt([x], power=power, mono=mono)[0]


def _reference_block(x, *, power: float, mono: bool):
    z = x[..., 0] + 1j * x[..., 1]
    c = jnp.power(jnp.abs(z), power)
    if mono:
        c = jnp.mean(c, axis=1, keepdims=True)
    return c


if __name__ == "__main__":
    key = jax.random.PRNGKey(0)
    B, C = 2, 2
    # ragged sliCQT-like blocks: (batch, channels, freq_bins, slices, time, 2)
    block_shapes = [
        (B, C, 5, 3, 8, 2),
        (B, C, 9, 3, 16, 2),
        (B, C, 13, 3, 32, 2),
    ]
    keys = jax.random.split(key, len(block_shapes))
    spec = [
        jax.random.normal(k, s, dtype=jnp.float32)
        for k, s in zip(keys, block_shapes)
    ]

    ok = True
    for power in (1.0, 2.0):
        for mono in (False, True):
            outs = jax.block_until_ready(
                complex_norm_slicqt(spec, power=power, mono=mono))
            for x, o in zip(spec, outs):
                ref = _reference_block(x, power=power, mono=mono)
                if o.shape != ref.shape or o.dtype != ref.dtype:
                    ok = False
                np.testing.assert_allclose(
                    np.asarray(o), np.asarray(ref), rtol=1e-5, atol=1e-5
                )

    if ok:
        print("KERNEL_OK")
</pallas_src>

<mosaic_0001>
module attributes {stable_mosaic.version = 11 : i64} {
  func.func @_complex_norm_kernel(%arg0: i32, %arg1: i32, %arg2: memref<1x2x16x128xf32, #tpu.memory_space<vmem>>, %arg3: memref<1x2x16x128xf32, #tpu.memory_space<vmem>>, %arg4: memref<1x2x16x128xf32, #tpu.memory_space<vmem>>) attributes {dimension_semantics = [#tpu.dimension_semantics<parallel>, #tpu.dimension_semantics<parallel>], iteration_bounds = array<i64: 1, 2>, scalar_prefetch = 0 : i64, scratch_operands = 0 : i64, tpu.core_type = #tpu.core_type<tc>, window_params = [{transform_indices = @transform_0, window_bounds = array<i64: 1, 2, 16, 128>}, {transform_indices = @transform_1, window_bounds = array<i64: 1, 2, 16, 128>}, {transform_indices = @transform_2, window_bounds = array<i64: 1, 2, 16, 128>}]} {
    %c0 = arith.constant 0 : index
    %c0_0 = arith.constant 0 : index
    %c0_1 = arith.constant 0 : index
    %c0_2 = arith.constant 0 : index
    %0 = vector.load %arg2[%c0, %c0_0, %c0_1, %c0_2] : memref<1x2x16x128xf32, #tpu.memory_space<vmem>>, vector<1x2x16x128xf32>
    %c0_3 = arith.constant 0 : index
    %c0_4 = arith.constant 0 : index
    %c0_5 = arith.constant 0 : index
    %c0_6 = arith.constant 0 : index
    %1 = vector.load %arg3[%c0_3, %c0_4, %c0_5, %c0_6] : memref<1x2x16x128xf32, #tpu.memory_space<vmem>>, vector<1x2x16x128xf32>
    %2 = arith.mulf %0, %0 : vector<1x2x16x128xf32>
    %3 = arith.mulf %1, %1 : vector<1x2x16x128xf32>
    %4 = arith.addf %2, %3 : vector<1x2x16x128xf32>
    %5 = math.sqrt %4 : vector<1x2x16x128xf32>
    %c0_7 = arith.constant 0 : index
    %c0_8 = arith.constant 0 : index
    %c0_9 = arith.constant 0 : index
    %c0_10 = arith.constant 0 : index
    %6 = vector.load %arg4[%c0_7, %c0_8, %c0_9, %c0_10] : memref<1x2x16x128xf32, #tpu.memory_space<vmem>>, vector<1x2x16x128xf32>
    tpu.vector_store %arg4[%c0_7, %c0_8, %c0_9, %c0_10], %5 {strides = array<i32>} : memref<1x2x16x128xf32, #tpu.memory_space<vmem>>, vector<1x2x16x128xf32>,
    return
  }
  func.func @transform_0(%arg0: i32, %arg1: i32) -> (i32, i32, i32, i32) {
    %c0_i32 = arith.constant 0 : i32
    %c0_i32_0 = arith.constant 0 : i32
    %c0_i32_1 = arith.constant 0 : i32
    return %arg1, %c0_i32, %arg0, %c0_i32_0 : i32, i32, i32, i32
  }
  func.func @transform_1(%arg0: i32, %arg1: i32) -> (i32, i32, i32, i32) {
    %c0_i32 = arith.constant 0 : i32
    %c0_i32_0 = arith.constant 0 : i32
    %c0_i32_1 = arith.constant 0 : i32
    return %arg1, %c0_i32, %arg0, %c0_i32_0 : i32, i32, i32, i32
  }
  func.func @transform_2(%arg0: i32, %arg1: i32) -> (i32, i32, i32, i32) {
    %c0_i32 = arith.constant 0 : i32
    %c0_i32_0 = arith.constant 0 : i32
    %c0_i32_1 = arith.constant 0 : i32
    return %arg1, %c0_i32, %arg0, %c0_i32_0 : i32, i32, i32, i32
  }
}

</mosaic_0001>

<llo_original>
// kernel: tpu_custom_call.1
$region0: #{tpu_custom_call.1}
  #allocation0 [shape = 'u32[]', space=smem, size = 0x4, offset = 0x4, fixed_abs, tag = 'smem constant byte address 0x4 - core index']
  #allocation1 [shape = 'u32[144,128]{1,0:T(1,128)}', space=vmem, size = 0x12000, scoped, tag = 'internal scratch']
  %s0 = inlined_call_operand.hbm [shape: f32[2,2,16,128], index: 0, kind: input, shape index: {}]
  %s1 = inlined_call_operand.hbm [shape: f32[2,2,16,128], index: 1, kind: input, shape index: {}]
  %s2 = inlined_call_operand.hbm [shape: f32[2,2,16,128], index: 2, kind: output, shape index: {}]
  %s3 = sld [smem:[#allocation0]]
  $region49: #{tpu_custom_call.1} parent=0
    _
  %s5 = ssub.s32 1, %s3
  %s6 = scalar_select 0, %s5, %s3
  $region1: #{tpu_custom_call.1} parent=0
    #allocation2 [shape = 'u8[32768]{0}', space=vmem, size = 0x8000, scoped, tag = 'input window, operand 0']
    #allocation3 [shape = 's32[2]{0}', space=sflag, size = 0x8, scoped, tag = 'scoped memory for tpu_custom_call.1']
    #allocation4 [shape = 's32[2]{0}', space=sflag, size = 0x8, scoped, tag = 'scoped memory for tpu_custom_call.1']
    #allocation5 [shape = 'u8[32768]{0}', space=vmem, size = 0x8000, scoped, tag = 'input window, operand 1']
    #allocation6 [shape = 's32[2]{0}', space=sflag, size = 0x8, scoped, tag = 'scoped memory for tpu_custom_call.1']
    #allocation7 [shape = 'u8[32768]{0}', space=vmem, size = 0x8000, scoped, tag = 'output window, operand 0']
    %7 = vsyncpa [#allocation3], 0
    %s8 = scalar_lea.sflag [#allocation3], 1
    %9 = vsyncpa %s8, 0
    %10 = vsyncpa [#allocation6], 0
    %s11 = scalar_lea.sflag [#allocation6], 1
    %12 = vsyncpa %s11, 0
    %13 = vsyncpa [#allocation4], 0
    %s14 = scalar_lea.sflag [#allocation4], 1
    %15 = vsyncpa %s14, 0
    loop: start=0, step=1, limit=4
    $region2: #{tpu_custom_call.1} parent=1 // loop_pre_header
      _
    $region3: #{tpu_custom_call.1} parent=1 // loop_header
      %s17 = sphi 0, %s21
      %p18 = scmp.ge.s32.totalorder %s17, 4
      %s24 = sphi 0, %s36
      %s25 = sphi 0, %s32
      %s26 = sphi 0, %s24
      %s27 = sphi 0, %s25
      %s28 = sphi 0, %s26
      %s29 = sphi 0, %s27
      %s41 = sphi 0, %s43
      %s44 = sphi 0, %s41
      %s45 = sphi 0, %s44
      %s61 = sphi 0, %s45
      %s69 = sphi 0, %s71
      %s72 = sphi 0, %s69
      %s73 = sphi 0, %s72
      %s89 = sphi 0, %s73
      %s97 = sphi 0, %s99
      %s100 = sphi 0, %s97
      %s101 = sphi 0, %s100
      %s117 = sphi 0, %s101
    $region4: #{tpu_custom_call.1} parent=1 // loop_header_branch
      %20 = sbr.rel (%p18) target = $region8
    $region5: #{tpu_custom_call.1} parent=1 // loop_body
      %s22 = ssub.s32 %s17, 1
      %s23 = ssub.s32 %s17, 2
      %s30 = sadd.s32 1, %s25
      %p31 = scmp.ge.s32.totalorder %s30, 2
      %s32 = scalar_select %p31, 0, %s30
      %s33 = sadd.s32 1, %s24
      %s34 = scalar_select %p31, %s33, %s24
      %p35 = scmp.ge.s32.totalorder %s34, 1
      %s36 = scalar_select %p35, 0, %s34
      %s37 = ssub.s32 %s25, %s32
      %s38 = ssub.s32 %s24, %s36
      %s39 = sor.u32 %s37, %s38
      %p40 = scmp.eq.s32.totalorder %s39, 0
      %s42 = sadd.s32 %s41, 1
      %s43 = scalar_select %p40, %s41, %s42
      %p46 = pneg %p40
      %p47 = scmp.eq.s32.totalorder %s17, 1
      %p48 = por %p46, %p47
      %p49 = scmp.ne.s32.totalorder %s41, %s44
      %p50 = scmp.eq.s32.totalorder %s17, 0
      %p51 = por %p49, %p50
      %p52 = scmp.ne.s32.totalorder %s41, %s44
      %p53 = scmp.eq.s32.totalorder %s22, 1
      %p54 = por %p52, %p53
      %p55 = scmp.ne.s32.totalorder %s44, %s45
      %p56 = scmp.eq.s32.totalorder %s22, 0
      %p57 = por %p55, %p56
      %p58 = scmp.ne.s32.totalorder %s44, %s45
      %p59 = scmp.eq.s32.totalorder %s23, 1
      %p60 = por %p58, %p59
      %p62 = scmp.ne.s32.totalorder %s45, %s61
      %p63 = scmp.eq.s32.totalorder %s23, 0
      %p64 = por %p62, %p63
      %s65 = ssub.s32 %s25, %s32
      %s66 = ssub.s32 %s24, %s36
      %s67 = sor.u32 %s65, %s66
      %p68 = scmp.eq.s32.totalorder %s67, 0
      %s70 = sadd.s32 %s69, 1
      %s71 = scalar_select %p68, %s69, %s70
      %p74 = pneg %p68
      %p75 = scmp.eq.s32.totalorder %s17, 1
      %p76 = por %p74, %p75
      %p77 = scmp.ne.s32.totalorder %s69, %s72
      %p78 = scmp.eq.s32.totalorder %s17, 0
      %p79 = por %p77, %p78
      %p80 = scmp.ne.s32.totalorder %s69, %s72
      %p81 = scmp.eq.s32.totalorder %s22, 1
      %p82 = por %p80, %p81
      %p83 = scmp.ne.s32.totalorder %s72, %s73
      %p84 = scmp.eq.s32.totalorder %s22, 0
      %p85 = por %p83, %p84
      %p86 = scmp.ne.s32.totalorder %s72, %s73
      %p87 = scmp.eq.s32.totalorder %s23, 1
      %p88 = por %p86, %p87
      %p90 = scmp.ne.s32.totalorder %s73, %s89
      %p91 = scmp.eq.s32.totalorder %s23, 0
      %p92 = por %p90, %p91
      %s93 = ssub.s32 %s25, %s32
      %s94 = ssub.s32 %s24, %s36
      %s95 = sor.u32 %s93, %s94
      %p96 = scmp.eq.s32.totalorder %s95, 0
      %s98 = sadd.s32 %s97, 1
      %s99 = scalar_select %p96, %s97, %s98
      %p102 = pneg %p96
      %p103 = scmp.eq.s32.totalorder %s17, 1
      %p104 = por %p102, %p103
      %p105 = scmp.ne.s32.totalorder %s97, %s100
      %p106 = scmp.eq.s32.totalorder %s17, 0
      %p107 = por %p105, %p106
      %p108 = scmp.ne.s32.totalorder %s97, %s100
      %p109 = scmp.eq.s32.totalorder %s22, 1
      %p110 = por %p108, %p109
      %p111 = scmp.ne.s32.totalorder %s100, %s101
      %p112 = scmp.eq.s32.totalorder %s22, 0
      %p113 = por %p111, %p112
      %p114 = scmp.ne.s32.totalorder %s100, %s101
      %p115 = scmp.eq.s32.totalorder %s23, 1
      %p116 = por %p114, %p115
      %p118 = scmp.ne.s32.totalorder %s101, %s117
      %p119 = scmp.eq.s32.totalorder %s23, 0
      %p120 = por %p118, %p119
      %p121 = scmp.le.s32.totalorder 1, %s17
      %p122 = scmp.lt.s32.totalorder %s17, 3
      %p123 = pnand %p121, %p122
      %p124 = pneg %p123
      // Predicated region
      $region9: #{tpu_custom_call.1} parent=5 // pred_check
        _
      $region10: #{tpu_custom_call.1} parent=5 // pred_check_branch
        %126 = sbr.rel (%p123) target = $region12
      $region11: #{tpu_custom_call.1} parent=5 // pred_region
        %s127 = ssub.s32 %s17, 1
      $region12: #{tpu_custom_call.1} parent=5 // pred_fallthru
        _
      %p128 = scmp.lt.s32.totalorder %s17, 2
      // Predicated region
      $region13: #{tpu_custom_call.1} parent=5 // pred_check
        %p129 = pneg %p128
      $region14: #{tpu_custom_call.1} parent=5 // pred_check_branch
        %131 = sbr.rel (%p129) target = $region16
      $region15: #{tpu_custom_call.1} parent=5 // pred_region
        // Predicated region
        $region17: #{tpu_custom_call.1} parent=15 // pred_check
          %p132 = pneg %p51
        $region18: #{tpu_custom_call.1} parent=15 // pred_check_branch
          %134 = sbr.rel (%p132) target = $region20
        $region19: #{tpu_custom_call.1} parent=15 // pred_region
          %s135 = sand.u32 %s41, 1
          %s136 = scalar_lea.sflag [#allocation3], %s135
          %s137 = sand.u32 %s41, 1
          %s138 = smul.addr %s137, 32
          %s139 = scalar_lea.vmem [#allocation2], %s138
          %s140 = smul.u32 2, %s24
          %s142 = ssub.s32 512, 512
          %143 = vsyncadd %s136, %s142
          %s144 = smul.addr %s25, 4
          %s145 = sadd.s32 %s140, %s144
          %s146 = smul.addr %s145, 128
          %s147 = scalar_lea.hbm %s0, %s146
          %s148 = sshll.u32 %s139, 4
          %s149 = int_to_ptr.vmem [resolvable:$true] %s148
          %154 = dma.hbm_to_vmem [thread:$0]  %s147, 512, %s149, %s136, 128, 128, 8
        $region20: #{tpu_custom_call.1} parent=15 // pred_fallthru
          _
        // Predicated region
        $region21: #{tpu_custom_call.1} parent=15 // pred_check
          %p155 = pneg %p79
        $region22: #{tpu_custom_call.1} parent=15 // pred_check_branch
          %157 = sbr.rel (%p155) target = $region24
        $region23: #{tpu_custom_call.1} parent=15 // pred_region
          %s158 = sand.u32 %s69, 1
          %s159 = scalar_lea.sflag [#allocation6], %s158
          %s160 = sand.u32 %s69, 1
          %s161 = smul.addr %s160, 32
          %s162 = scalar_lea.vmem [#allocation5], %s161
          %s163 = smul.u32 2, %s24
          %s165 = ssub.s32 512, 512
          %166 = vsyncadd %s159, %s165
          %s167 = smul.addr %s25, 4
          %s168 = sadd.s32 %s163, %s167
          %s169 = smul.addr %s168, 128
          %s170 = scalar_lea.hbm %s1, %s169
          %s171 = sshll.u32 %s162, 4
          %s172 = int_to_ptr.vmem [resolvable:$true] %s171
          %177 = dma.hbm_to_vmem [thread:$0]  %s170, 512, %s172, %s159, 128, 128, 8
        $region24: #{tpu_custom_call.1} parent=15 // pred_fallthru
          _
      $region16: #{tpu_custom_call.1} parent=5 // pred_fallthru
        _
      %p178 = scmp.le.s32.totalorder 1, %s17
      %p179 = scmp.lt.s32.totalorder %s17, 3
      %p180 = pnand %p178, %p179
      %p181 = pneg %p180
      // Predicated region
      $region25: #{tpu_custom_call.1} parent=5 // pred_check
        _
      $region26: #{tpu_custom_call.1} parent=5 // pred_check_branch
        %183 = sbr.rel (%p180) target = $region28
      $region27: #{tpu_custom_call.1} parent=5 // pred_region
        %s184 = ssub.s32 %s17, 1
        %s185 = sand.u32 %s44, 1
        %s186 = scalar_lea.sflag [#allocation3], %s185
        %s187 = sand.u32 %s44, 1
        %s188 = smul.addr %s187, 32
        %s189 = scalar_lea.vmem [#allocation2], %s188
        // Predicated region
        $region29: #{tpu_custom_call.1} parent=27 // pred_check
          %p190 = pneg %p57
        $region30: #{tpu_custom_call.1} parent=27 // pred_check_branch
          %192 = sbr.rel (%p190) target = $region32
        $region31: #{tpu_custom_call.1} parent=27 // pred_region
          %193 = dma.done %s186, 512
        $region32: #{tpu_custom_call.1} parent=27 // pred_fallthru
          _
        %s194 = sand.u32 %s72, 1
        %s195 = scalar_lea.sflag [#allocation6], %s194
        %s196 = sand.u32 %s72, 1
        %s197 = smul.addr %s196, 32
        %s198 = scalar_lea.vmem [#allocation5], %s197
        // Predicated region
        $region33: #{tpu_custom_call.1} parent=27 // pred_check
          %p199 = pneg %p85
        $region34: #{tpu_custom_call.1} parent=27 // pred_check_branch
          %201 = sbr.rel (%p199) target = $region36
        $region35: #{tpu_custom_call.1} parent=27 // pred_region
          %202 = dma.done %s195, 512
        $region36: #{tpu_custom_call.1} parent=27 // pred_fallthru
          _
        %s203 = sand.u32 %s44, 1
        %s204 = scalar_lea.sflag [#allocation3], %s203
        %s205 = sand.u32 %s44, 1
        %s206 = smul.addr %s205, 32
        %s207 = scalar_lea.vmem [#allocation2], %s206
        %p208 = pneg %p57
        %p209 = pneg %p54
        %s210 = sand.u32 %s72, 1
        %s211 = scalar_lea.sflag [#allocation6], %s210
        %s212 = sand.u32 %s72, 1
        %s213 = smul.addr %s212, 32
        %s214 = scalar_lea.vmem [#allocation5], %s213
        %p215 = pneg %p85
        %p216 = pneg %p82
        %p217 = pneg %p113
        %p218 = pneg %p110
        %s219 = sand.u32 %s100, 1
        %s220 = scalar_lea.sflag [#allocation4], %s219
        %s221 = sand.u32 %s100, 1
        %s222 = smul.addr %s221, 32
        %s223 = scalar_lea.vmem [#allocation7], %s222
        %s224 = smul.u32 2, %s26
        %s225 = smul.u32 2, %s26
        %s226 = smul.u32 2, %s26
        %v227 = vld [vmem:[%s189] sm:$0xff]
        %v228 = vld [vmem:[%s189 + $0x8] sm:$0xff]
        %v229 = vld [vmem:[%s189 + $0x10] sm:$0xff]
        %v230 = vld [vmem:[%s189 + $0x18] sm:$0xff]
        %v231 = vld [vmem:[%s198] sm:$0xff]
        %v232 = vld [vmem:[%s198 + $0x8] sm:$0xff]
        %v233 = vld [vmem:[%s198 + $0x10] sm:$0xff]
        %v234 = vld [vmem:[%s198 + $0x18] sm:$0xff]
        %v235 = vmul.f32 %v227, %v227
        %v236 = vmul.f32 %v228, %v228
        %v237 = vmul.f32 %v229, %v229
        %v238 = vmul.f32 %v230, %v230
        %v239 = vmul.f32 %v231, %v231
        %v240 = vmul.f32 %v232, %v232
        %v241 = vmul.f32 %v233, %v233
        %v242 = vmul.f32 %v234, %v234
        %v243 = vadd.f32 %v235, %v239
        %v244 = vadd.f32 %v236, %v240
        %v245 = vadd.f32 %v237, %v241
        %v246 = vadd.f32 %v238, %v242
        %v247 = vrsqrt.pop %v243
        %v248 = vmul.f32 %v243, %v247
        %vm249 = vcmp.eq.f32.partialorder %v243, inf
        %v250 = vsel %vm249, %v243, %v248
        %vm251 = vcmp.eq.f32.partialorder %v243, 0.0
        %v252 = vand.u32 %v243, 2147483648
        %v253 = vsel %vm251, %v252, %v250
        %v254 = vrsqrt.pop %v244
        %v255 = vmul.f32 %v244, %v254
        %vm256 = vcmp.eq.f32.partialorder %v244, inf
        %v257 = vsel %vm256, %v244, %v255
        %vm258 = vcmp.eq.f32.partialorder %v244, 0.0
        %v259 = vand.u32 %v244, 2147483648
        %v260 = vsel %vm258, %v259, %v257
        %v261 = vrsqrt.pop %v245
        %v262 = vmul.f32 %v245, %v261
        %vm263 = vcmp.eq.f32.partialorder %v245, inf
        %v264 = vsel %vm263, %v245, %v262
        %vm265 = vcmp.eq.f32.partialorder %v245, 0.0
        %v266 = vand.u32 %v245, 2147483648
        %v267 = vsel %vm265, %v266, %v264
        %v268 = vrsqrt.pop %v246
        %v269 = vmul.f32 %v246, %v268
        %vm270 = vcmp.eq.f32.partialorder %v246, inf
        %v271 = vsel %vm270, %v246, %v269
        %vm272 = vcmp.eq.f32.partialorder %v246, 0.0
        %v273 = vand.u32 %v246, 2147483648
        %v274 = vsel %vm272, %v273, %v271
        %275 = vst [vmem:[%s223] sm:$0xff] %v253
        %276 = vst [vmem:[%s223 + $0x8] sm:$0xff] %v260
        %277 = vst [vmem:[%s223 + $0x10] sm:$0xff] %v267
        %278 = vst [vmem:[%s223 + $0x18] sm:$0xff] %v274
        %s279 = sand.u32 %s100, 1
        %s280 = scalar_lea.sflag [#allocation4], %s279
        %s281 = sand.u32 %s100, 1
        %s282 = smul.addr %s281, 32
        %s283 = scalar_lea.vmem [#allocation7], %s282
        // Predicated region
        $region37: #{tpu_custom_call.1} parent=27 // pred_check
          %p284 = pneg %p110
        $region38: #{tpu_custom_call.1} parent=27 // pred_check_branch
          %286 = sbr.rel (%p284) target = $region40
        $region39: #{tpu_custom_call.1} parent=27 // pred_region
          %s287 = smul.u32 2, %s26
          %s289 = ssub.s32 512, 512
          %290 = vsyncadd %s280, %s289
          %s291 = smul.addr %s27, 4
          %s292 = sadd.s32 %s287, %s291
          %s293 = smul.addr %s292, 128
          %s294 = scalar_lea.hbm %s2, %s293
          %s295 = sshll.u32 %s283, 4
          %s296 = int_to_ptr.vmem [resolvable:$true] %s295
          %301 = dma.vmem_to_hbm [thread:$0]  %s296, 512, %s294, %s280, 128, 128, 8
        $region40: #{tpu_custom_call.1} parent=27 // pred_fallthru
          _
      $region28: #{tpu_custom_call.1} parent=5 // pred_fallthru
        _
      %p302 = scmp.le.s32.totalorder 2, %s17
      // Predicated region
      $region41: #{tpu_custom_call.1} parent=5 // pred_check
        %p303 = pneg %p302
      $region42: #{tpu_custom_call.1} parent=5 // pred_check_branch
        %305 = sbr.rel (%p303) target = $region44
      $region43: #{tpu_custom_call.1} parent=5 // pred_region
        %s306 = ssub.s32 %s17, 2
        // Predicated region
        $region45: #{tpu_custom_call.1} parent=43 // pred_check
          %p307 = pneg %p116
        $region46: #{tpu_custom_call.1} parent=43 // pred_check_branch
          %309 = sbr.rel (%p307) target = $region48
        $region47: #{tpu_custom_call.1} parent=43 // pred_region
          %s310 = sand.u32 %s101, 1
          %s311 = scalar_lea.sflag [#allocation4], %s310
          %s312 = sand.u32 %s101, 1
          %s313 = smul.addr %s312, 32
          %s314 = scalar_lea.vmem [#allocation7], %s313
          %315 = dma.done %s311, 512
        $region48: #{tpu_custom_call.1} parent=43 // pred_fallthru
          _
      $region44: #{tpu_custom_call.1} parent=5 // pred_fallthru
        _
    $region6: #{tpu_custom_call.1} parent=1 // loop_footer
      %s21 = sadd.s32 1, %s17
    $region7: #{tpu_custom_call.1} parent=1 // loop_footer_branch
      %16 = sbr.rel target = $region3
    $region8: #{tpu_custom_call.1} parent=1 // loop_exit
      _
    %316 = vsyncpa [#allocation3], 1
    %s317 = scalar_lea.sflag [#allocation3], 1
    %318 = vsyncpa %s317, 1
    %319 = vsyncpa [#allocation6], 1
    %s320 = scalar_lea.sflag [#allocation6], 1
    %321 = vsyncpa %s320, 1
    %322 = vsyncpa [#allocation4], 1
    %s323 = scalar_lea.sflag [#allocation4], 1
    %324 = vsyncpa %s323, 1

</llo_original>
